<compile_context>
chip_gen: v7x
topology: tpu7x:2x2x1
jax: 0.10.0
libtpu: 0.0.40
codegen_flags: <defaults>
</compile_context>

<pallas_src>
import jax
import jax.numpy as jnp
from jax.experimental import pallas as pl
from jax.experimental.pallas import tpu as pltpu

LANE = 128  # TPU lane width; C / H / A are padded to multiples of this.


def _round_up(v, m):
    return ((v + m - 1) // m) * m


def net_kernel(x_ref, ct_ref, cbias_ref, beta_ref, w1x_ref, w1r_ref, b1_ref,
               w2_ref, b2_ref, out_ref):
    """One batch tile of the fused RBFN forward pass (all operands in VMEM)."""
    use_bf16 = w1x_ref.dtype == jnp.bfloat16   # trace-time; set by param dtype
    x = x_ref[...]                                         # (TB, D) f32

    # RBF exponent — kept strictly f32 (tiny K=D matmul, protects exp()):
    #   -beta*||x - c||^2 = x @ (2*beta*c)^T - beta*||c||^2 - beta*||x||^2
    x2 = jnp.sum(x * x, axis=1, keepdims=True)             # (TB, 1)
    logit = (jnp.dot(x, ct_ref[...], preferred_element_type=jnp.float32)
             + cbias_ref[...] - x2 * beta_ref[...])        # (TB, C_pad)
    # Analytically <= 0 for beta > 0; clamp so FP cancellation in the expanded
    # form can never push radial above 1.0 (parity with the reference's direct
    # squared distance, which is >= 0).
    radial = jnp.exp(jnp.minimum(logit, 0.0))              # (TB, C_pad) f32

    # Hidden layer: cat([x, radial]) @ W1^T split into two matmuls, then ReLU.
    # Weights are pre-cast (bf16 path) so only activations are cast here.
    xa = x.astype(jnp.bfloat16) if use_bf16 else x
    ra = radial.astype(jnp.bfloat16) if use_bf16 else radial
    h = (jnp.dot(xa, w1x_ref[...], preferred_element_type=jnp.float32)
         + jnp.dot(ra, w1r_ref[...], preferred_element_type=jnp.float32)
         + b1_ref[...])                                    # (TB, H_pad) f32
    h = jnp.maximum(h, 0.0)
    ha = h.astype(jnp.bfloat16) if use_bf16 else h

    # Lane-dense (TB, A_pad) store; wrapper slices off the padded columns.
    out_ref[...] = (jnp.dot(ha, w2_ref[...], preferred_element_type=jnp.float32)
                    + b2_ref[...]).astype(out_ref.dtype)


def net_forward(x, kparams, n_actions, *, batch_tile=2048,
                out_dtype=jnp.float32):
    """Fused Net.forward.  Precision is chosen by the dtype of kparams
    (f32 everywhere, or bf16 matmul weights via cast_params_bf16)."""
    ct, cbias, beta, w1x, w1r, b1, w2p, b2p = kparams
    B, D = x.shape
    C_pad = ct.shape[1]
    H_pad = w1x.shape[1]
    A_pad = w2p.shape[1]

    # Batch tiling: tiny B -> single full block; otherwise at least two tiles
    # (feeds both v7x TensorCores / megacore), capped at batch_tile.
    if B <= 16:
        tb = B
    else:
        tb = min(batch_tile, max(8, _round_up(pl.cdiv(B, 2), 8)))
    b_pad = _round_up(B, tb)
    x_in = x if b_pad == B else jnp.pad(x, ((0, b_pad - B), (0, 0)))
    grid = (b_pad // tb,)

    def resident(arr):
        # Full-array block, same tile every grid step -> stays VMEM-resident.
        return pl.BlockSpec(arr.shape, lambda i: (0, 0))

    flops = 2 * b_pad * (D * C_pad + D * H_pad + C_pad * H_pad + H_pad * A_pad)
    param_bytes = sum(int(p.size) * p.dtype.itemsize for p in kparams)
    out_itemsize = jnp.dtype(out_dtype).itemsize
    bytes_accessed = (x_in.size * x_in.dtype.itemsize
                      + b_pad * A_pad * out_itemsize + param_bytes)

    # Resident weights + double-buffered streamed x/out tiles; only raise the
    # scoped-VMEM limit when a very large batch_tile actually needs it.
    vmem_need = param_bytes + 2 * (tb * D * x_in.dtype.itemsize
                                   + tb * A_pad * out_itemsize)
    cp_kwargs = dict(dimension_semantics=("parallel",))
    if vmem_need > 12 * 1024 * 1024:
        cp_kwargs["vmem_limit_bytes"] = min(2 * vmem_need, 100 * 1024 * 1024)

    out_padded = pl.pallas_call(
        net_kernel,
        out_shape=jax.ShapeDtypeStruct((b_pad, A_pad), out_dtype),
        grid=grid,
        in_specs=[
            pl.BlockSpec((tb, D), lambda i: (i, 0)),   # streamed activations
            resident(ct), resident(cbias), resident(beta),
            resident(w1x), resident(w1r), resident(b1),
            resident(w2p), resident(b2p),
        ],
        out_specs=pl.BlockSpec((tb, A_pad), lambda i: (i, 0)),
        compiler_params=pltpu.CompilerParams(**cp_kwargs),
        cost_estimate=pl.CostEstimate(flops=flops,
                                      transcendentals=b_pad * C_pad,
                                      bytes_accessed=bytes_accessed),
    )(x_in, ct, cbias, beta, w1x, w1r, b1, w2p, b2p)

    # TODO(synk): for large replay batches, consume the padded (B, A_pad) slab
    # directly in the DQN loss (gather action columns there, mask padded rows)
    # to skip this extra HBM slice pass.
    return out_padded[:B, :n_actions]


def init_params(key, n_states, n_actions, num_centers=100, hidden=100):
    """Returns (raw PyTorch-equivalent params, hoisted+padded kernel params)."""
    kc, kw1, kw2, kb2 = jax.random.split(key, 4)

    # --- Raw parameters, matching the PyTorch module's initialization ------
    # Net: centers = torch.rand(100, N_STATES); RBFN: beta = ones(1, C).
    centers = jax.random.uniform(kc, (num_centers, n_states), jnp.float32)
    beta = jnp.ones((1, num_centers), jnp.float32)
    # RBFN.linear: Linear(C + D, hidden); weight ~ N(0, 0.02), bias = 0.
    w1 = 0.02 * jax.random.normal(kw1, (hidden, num_centers + n_states),
                                  jnp.float32)
    b1 = jnp.zeros((hidden,), jnp.float32)
    # Net.out: Linear(hidden, A); weight ~ N(0, 0.1), bias keeps default init.
    w2 = 0.1 * jax.random.normal(kw2, (n_actions, hidden), jnp.float32)
    bound = 1.0 / float(hidden) ** 0.5
    b2 = jax.random.uniform(kb2, (n_actions,), jnp.float32, -bound, bound)
    raw = (centers, beta, w1, b1, w2, b2)

    # --- Hoisted + lane-padded kernel parameters (done once, not per call) --
    C_pad = _round_up(num_centers, LANE)
    H_pad = _round_up(hidden, LANE)
    A_pad = _round_up(n_actions, LANE)

    ct = (2.0 * beta.T * centers).T                               # (D, C)
    cbias = -beta * jnp.sum(centers * centers, axis=1)[None, :]   # (1, C)

    def pad2(a, rows, cols):
        return jnp.pad(a, ((0, rows - a.shape[0]), (0, cols - a.shape[1])))

    # Padded C columns: ct/cbias/beta = 0 -> logit = 0 -> radial = 1, which is
    # annihilated by the zero padded rows of w1r.  Padded H/A cols are zero.
    kparams = (
        pad2(ct, n_states, C_pad),                 # (D, C_pad)
        pad2(cbias, 1, C_pad),                     # (1, C_pad)
        pad2(beta, 1, C_pad),                      # (1, C_pad)
        pad2(w1[:, :n_states].T, n_states, H_pad),  # (D, H_pad)   x-part
        pad2(w1[:, n_states:].T, C_pad, H_pad),     # (C_pad, H_pad) radial-part
        pad2(b1[None, :], 1, H_pad),               # (1, H_pad)
        pad2(w2.T, H_pad, A_pad),                  # (H_pad, A_pad)
        pad2(b2[None, :], 1, A_pad),               # (1, A_pad)
    )
    return raw, kparams


def cast_params_bf16(kparams):
    """Pre-cast the big matmul weights to bf16 ONCE (v6e/v7x fast path).

    The exp-feeding path (ct, cbias, beta) and all biases stay f32; on v5e
    simply don't call this (keep the f32 params)."""
    ct, cbias, beta, w1x, w1r, b1, w2p, b2p = kparams
    return (ct, cbias, beta,
            w1x.astype(jnp.bfloat16), w1r.astype(jnp.bfloat16), b1,
            w2p.astype(jnp.bfloat16), b2p)


def _reference_forward(x, raw):
    """Pure-JAX reference mirroring the PyTorch module exactly."""
    centers, beta, w1, b1, w2, b2 = raw
    diff = centers[None, :, :] - x[:, None, :]              # (B, C, D)
    radial = jnp.exp(-beta * jnp.sum(diff * diff, axis=2))  # (B, C)
    cat = jnp.concatenate([x, radial], axis=1)              # (B, D + C)
    h = jnp.maximum(cat @ w1.T + b1, 0.0)                   # (B, H)
    return h @ w2.T + b2                                    # (B, A)


if __name__ == "__main__":
    N_STATES = 16
    N_ACTIONS = 8
    BATCH = 4

    key = jax.random.PRNGKey(0)
    kp, kx1, kx2 = jax.random.split(key, 3)
    raw, kparams = init_params(kp, N_STATES, N_ACTIONS)

    # Small-batch f32 path (single full block).
    x = jax.random.normal(kx1, (BATCH, N_STATES), dtype=jnp.float32)
    out = net_forward(x, kparams, N_ACTIONS)
    jax.block_until_ready(out)
    assert out.shape == (BATCH, N_ACTIONS)
    ref = _reference_forward(x, raw)
    assert jnp.allclose(out, ref, atol=1e-4, rtol=1e-3)

    # Multi-tile path (grid >= 2, exercises batch padding) with bf16 MXU
    # weights; the exp-feeding matmul and all elementwise math stay f32.
    xb = jax.random.normal(kx2, (40, N_STATES), dtype=jnp.float32)
    out_bf = net_forward(xb, cast_params_bf16(kparams), N_ACTIONS)
    jax.block_until_ready(out_bf)
    assert out_bf.shape == (40, N_ACTIONS)
    ref_b = _reference_forward(xb, raw)
    assert jnp.allclose(out_bf, ref_b, atol=2e-2, rtol=2e-2)

    print("KERNEL_OK")
</pallas_src>

<mosaic_0001>
module attributes {stable_mosaic.version = 11 : i64} {
  func.func @net_kernel(%arg0: i32, %arg1: memref<4x16xf32, #tpu.memory_space<vmem>>, %arg2: memref<16x128xf32, #tpu.memory_space<vmem>>, %arg3: memref<1x128xf32, #tpu.memory_space<vmem>>, %arg4: memref<1x128xf32, #tpu.memory_space<vmem>>, %arg5: memref<16x128xf32, #tpu.memory_space<vmem>>, %arg6: memref<128x128xf32, #tpu.memory_space<vmem>>, %arg7: memref<1x128xf32, #tpu.memory_space<vmem>>, %arg8: memref<128x128xf32, #tpu.memory_space<vmem>>, %arg9: memref<1x128xf32, #tpu.memory_space<vmem>>, %arg10: memref<4x128xf32, #tpu.memory_space<vmem>>) attributes {dimension_semantics = [#tpu.dimension_semantics<parallel>], iteration_bounds = array<i64: 1>, scalar_prefetch = 0 : i64, scratch_operands = 0 : i64, tpu.core_type = #tpu.core_type<tc>, window_params = [{transform_indices = @transform_0, window_bounds = array<i64: 4, 16>}, {pipeline_mode = #tpu.pipeline_mode<synchronous>, transform_indices = @transform_1, window_bounds = array<i64: 16, 128>}, {pipeline_mode = #tpu.pipeline_mode<synchronous>, transform_indices = @transform_2, window_bounds = array<i64: 1, 128>}, {pipeline_mode = #tpu.pipeline_mode<synchronous>, transform_indices = @transform_3, window_bounds = array<i64: 1, 128>}, {pipeline_mode = #tpu.pipeline_mode<synchronous>, transform_indices = @transform_4, window_bounds = array<i64: 16, 128>}, {pipeline_mode = #tpu.pipeline_mode<synchronous>, transform_indices = @transform_5, window_bounds = array<i64: 128, 128>}, {pipeline_mode = #tpu.pipeline_mode<synchronous>, transform_indices = @transform_6, window_bounds = array<i64: 1, 128>}, {pipeline_mode = #tpu.pipeline_mode<synchronous>, transform_indices = @transform_7, window_bounds = array<i64: 128, 128>}, {pipeline_mode = #tpu.pipeline_mode<synchronous>, transform_indices = @transform_8, window_bounds = array<i64: 1, 128>}, {transform_indices = @transform_9, window_bounds = array<i64: 4, 128>}]} {
    %c0 = arith.constant 0 : index
    %c0_0 = arith.constant 0 : index
    %0 = vector.load %arg1[%c0, %c0_0] : memref<4x16xf32, #tpu.memory_space<vmem>>, vector<4x16xf32>
    %1 = arith.mulf %0, %0 : vector<4x16xf32>
    %cst = arith.constant dense<0.000000e+00> : vector<4xf32>
    %2 = vector.multi_reduction <add>, %1, %cst [1] : vector<4x16xf32> to vector<4xf32>
    %3 = vector.shape_cast %2 : vector<4xf32> to vector<4x1xf32>
    %c0_1 = arith.constant 0 : index
    %c0_2 = arith.constant 0 : index
    %4 = vector.load %arg2[%c0_1, %c0_2] : memref<16x128xf32, #tpu.memory_space<vmem>>, vector<16x128xf32>
    %cst_3 = arith.constant dense<0.000000e+00> : vector<4x128xf32>
    %5 = tpu.matmul %0, %4, %cst_3 {dimension_numbers = #tpu.dot_dimension_numbers<[1], [0], [0], [1], [0, 0, 1, 1], [], []>} : vector<4x16xf32>, vector<16x128xf32>, vector<4x128xf32> -> vector<4x128xf32>
    %c0_4 = arith.constant 0 : index
    %c0_5 = arith.constant 0 : index
    %6 = vector.load %arg3[%c0_4, %c0_5] : memref<1x128xf32, #tpu.memory_space<vmem>>, vector<1x128xf32>
    %7 = vector.broadcast %6 : vector<1x128xf32> to vector<4x128xf32>
    %8 = arith.addf %5, %7 : vector<4x128xf32>
    %c0_6 = arith.constant 0 : index
    %c0_7 = arith.constant 0 : index
    %9 = vector.load %arg4[%c0_6, %c0_7] : memref<1x128xf32, #tpu.memory_space<vmem>>, vector<1x128xf32>
    %10 = vector.broadcast %3 : vector<4x1xf32> to vector<4x128xf32>
    %11 = vector.broadcast %9 : vector<1x128xf32> to vector<4x128xf32>
    %12 = arith.mulf %10, %11 : vector<4x128xf32>
    %13 = arith.subf %8, %12 : vector<4x128xf32>
    %cst_8 = arith.constant 0.000000e+00 : f32
    %14 = vector.broadcast %cst_8 : f32 to vector<4x128xf32>
    %15 = arith.minimumf %13, %14 : vector<4x128xf32>
    %16 = math.exp %15 : vector<4x128xf32>
    %c0_9 = arith.constant 0 : index
    %c0_10 = arith.constant 0 : index
    %17 = vector.load %arg5[%c0_9, %c0_10] : memref<16x128xf32, #tpu.memory_space<vmem>>, vector<16x128xf32>
    %cst_11 = arith.constant dense<0.000000e+00> : vector<4x128xf32>
    %18 = tpu.matmul %0, %17, %cst_11 {dimension_numbers = #tpu.dot_dimension_numbers<[1], [0], [0], [1], [0, 0, 1, 1], [], []>} : vector<4x16xf32>, vector<16x128xf32>, vector<4x128xf32> -> vector<4x128xf32>
    %c0_12 = arith.constant 0 : index
    %c0_13 = arith.constant 0 : index
    %19 = vector.load %arg6[%c0_12, %c0_13] : memref<128x128xf32, #tpu.memory_space<vmem>>, vector<128x128xf32>
    %cst_14 = arith.constant dense<0.000000e+00> : vector<4x128xf32>
    %20 = tpu.matmul %16, %19, %cst_14 {dimension_numbers = #tpu.dot_dimension_numbers<[1], [0], [0], [1], [0, 0, 1, 1], [], []>} : vector<4x128xf32>, vector<128x128xf32>, vector<4x128xf32> -> vector<4x128xf32>
    %21 = arith.addf %18, %20 : vector<4x128xf32>
    %c0_15 = arith.constant 0 : index
    %c0_16 = arith.constant 0 : index
    %22 = vector.load %arg7[%c0_15, %c0_16] : memref<1x128xf32, #tpu.memory_space<vmem>>, vector<1x128xf32>
    %23 = vector.broadcast %22 : vector<1x128xf32> to vector<4x128xf32>
    %24 = arith.addf %21, %23 : vector<4x128xf32>
    %cst_17 = arith.constant 0.000000e+00 : f32
    %25 = vector.broadcast %cst_17 : f32 to vector<4x128xf32>
    %26 = arith.maximumf %24, %25 : vector<4x128xf32>
    %c0_18 = arith.constant 0 : index
    %c0_19 = arith.constant 0 : index
    %27 = vector.load %arg8[%c0_18, %c0_19] : memref<128x128xf32, #tpu.memory_space<vmem>>, vector<128x128xf32>
    %cst_20 = arith.constant dense<0.000000e+00> : vector<4x128xf32>
    %28 = tpu.matmul %26, %27, %cst_20 {dimension_numbers = #tpu.dot_dimension_numbers<[1], [0], [0], [1], [0, 0, 1, 1], [], []>} : vector<4x128xf32>, vector<128x128xf32>, vector<4x128xf32> -> vector<4x128xf32>
    %c0_21 = arith.constant 0 : index
    %c0_22 = arith.constant 0 : index
    %29 = vector.load %arg9[%c0_21, %c0_22] : memref<1x128xf32, #tpu.memory_space<vmem>>, vector<1x128xf32>
    %30 = vector.broadcast %29 : vector<1x128xf32> to vector<4x128xf32>
    %31 = arith.addf %28, %30 : vector<4x128xf32>
    %c0_23 = arith.constant 0 : index
    %c0_24 = arith.constant 0 : index
    %32 = vector.load %arg10[%c0_23, %c0_24] : memref<4x128xf32, #tpu.memory_space<vmem>>, vector<4x128xf32>
    tpu.vector_store %arg10[%c0_23, %c0_24], %31 {strides = array<i32>} : memref<4x128xf32, #tpu.memory_space<vmem>>, vector<4x128xf32>,
    return
  }
  func.func @transform_0(%arg0: i32) -> (i32, i32) {
    %c0_i32 = arith.constant 0 : i32
    %c0_i32_0 = arith.constant 0 : i32
    return %arg0, %c0_i32 : i32, i32
  }
  func.func @transform_1(%arg0: i32) -> (i32, i32) {
    %c0_i32 = arith.constant 0 : i32
    %c0_i32_0 = arith.constant 0 : i32
    %c0_i32_1 = arith.constant 0 : i32
    return %c0_i32, %c0_i32_0 : i32, i32
  }
  func.func @transform_2(%arg0: i32) -> (i32, i32) {
    %c0_i32 = arith.constant 0 : i32
    %c0_i32_0 = arith.constant 0 : i32
    %c0_i32_1 = arith.constant 0 : i32
    return %c0_i32, %c0_i32_0 : i32, i32
  }
  func.func @transform_3(%arg0: i32) -> (i32, i32) {
    %c0_i32 = arith.constant 0 : i32
    %c0_i32_0 = arith.constant 0 : i32
    %c0_i32_1 = arith.constant 0 : i32
    return %c0_i32, %c0_i32_0 : i32, i32
  }
  func.func @transform_4(%arg0: i32) -> (i32, i32) {
    %c0_i32 = arith.constant 0 : i32
    %c0_i32_0 = arith.constant 0 : i32
    %c0_i32_1 = arith.constant 0 : i32
    return %c0_i32, %c0_i32_0 : i32, i32
  }
  func.func @transform_5(%arg0: i32) -> (i32, i32) {
    %c0_i32 = arith.constant 0 : i32
    %c0_i32_0 = arith.constant 0 : i32
    %c0_i32_1 = arith.constant 0 : i32
    return %c0_i32, %c0_i32_0 : i32, i32
  }
  func.func @transform_6(%arg0: i32) -> (i32, i32) {
    %c0_i32 = arith.constant 0 : i32
    %c0_i32_0 = arith.constant 0 : i32
    %c0_i32_1 = arith.constant 0 : i32
    return %c0_i32, %c0_i32_0 : i32, i32
  }
  func.func @transform_7(%arg0: i32) -> (i32, i32) {
    %c0_i32 = arith.constant 0 : i32
    %c0_i32_0 = arith.constant 0 : i32
    %c0_i32_1 = arith.constant 0 : i32
    return %c0_i32, %c0_i32_0 : i32, i32
  }
  func.func @transform_8(%arg0: i32) -> (i32, i32) {
    %c0_i32 = arith.constant 0 : i32
    %c0_i32_0 = arith.constant 0 : i32
    %c0_i32_1 = arith.constant 0 : i32
    return %c0_i32, %c0_i32_0 : i32, i32
  }
  func.func @transform_9(%arg0: i32) -> (i32, i32) {
    %c0_i32 = arith.constant 0 : i32
    %c0_i32_0 = arith.constant 0 : i32
    return %arg0, %c0_i32 : i32, i32
  }
}

</mosaic_0001>

<llo_original>
// kernel: tpu_custom_call.1
$region0: #{tpu_custom_call.1}
  #allocation0 [shape = 'u32[]', space=smem, size = 0x4, offset = 0x4, fixed_abs, tag = 'smem constant byte address 0x4 - core index']
  #allocation1 [shape = 'u32[144,128]{1,0:T(1,128)}', space=vmem, size = 0x12000, scoped, tag = 'internal scratch']
  %s0 = inlined_call_operand.hbm [shape: f32[4,16], index: 0, kind: input, shape index: {}]
  %s1 = inlined_call_operand.hbm [shape: f32[16,128], index: 1, kind: input, shape index: {}]
  %s2 = inlined_call_operand.vmem [shape: f32[1,128], index: 2, kind: input, shape index: {}]
  %s3 = inlined_call_operand.vmem [shape: f32[1,128], index: 3, kind: input, shape index: {}]
  %s4 = inlined_call_operand.hbm [shape: f32[16,128], index: 4, kind: input, shape index: {}]
  %s5 = inlined_call_operand.hbm [shape: f32[128,128], index: 5, kind: input, shape index: {}]
  %s6 = inlined_call_operand.vmem [shape: f32[1,128], index: 6, kind: input, shape index: {}]
  %s7 = inlined_call_operand.hbm [shape: f32[128,128], index: 7, kind: input, shape index: {}]
  %s8 = inlined_call_operand.vmem [shape: f32[1,128], index: 8, kind: input, shape index: {}]
  %s9 = inlined_call_operand.hbm [shape: f32[4,128], index: 9, kind: output, shape index: {}]
  %s10 = sld [smem:[#allocation0]]
  $region66: #{tpu_custom_call.1} parent=0
    _
  %s12 = ssub.s32 1, %s10
  %s13 = scalar_select 0, %s12, %s10
  $region1: #{tpu_custom_call.1} parent=0
    #allocation2 [shape = 'u8[2048]{0}', space=vmem, size = 0x800, scoped, tag = 'input window, operand 0, single buffered']
    #allocation3 [shape = 's32[1]{0}', space=sflag, size = 0x4, scoped, tag = 'scoped memory for tpu_custom_call.1']
    #allocation4 [shape = 's32[1]{0}', space=sflag, size = 0x4, scoped, tag = 'scoped memory for tpu_custom_call.1']
    #allocation5 [shape = 'u8[8192]{0}', space=vmem, size = 0x2000, scoped, tag = 'input window, operand 1, single buffered']
    #allocation6 [shape = 's32[1]{0}', space=sflag, size = 0x4, scoped, tag = 'scoped memory for tpu_custom_call.1']
    #allocation7 [shape = 'u8[8192]{0}', space=vmem, size = 0x2000, scoped, tag = 'input window, operand 4, single buffered']
    #allocation8 [shape = 'u8[65536]{0}', space=vmem, size = 0x10000, scoped, tag = 'input window, operand 5, single buffered']
    #allocation9 [shape = 's32[1]{0}', space=sflag, size = 0x4, scoped, tag = 'scoped memory for tpu_custom_call.1']
    #allocation10 [shape = 'u8[65536]{0}', space=vmem, size = 0x10000, scoped, tag = 'input window, operand 7, single buffered']
    #allocation11 [shape = 'u8[2048]{0}', space=vmem, size = 0x800, scoped, tag = 'output window, operand 0, single buffered']
    %14 = vsyncpa [#allocation3], 0
    %15 = vsyncpa [#allocation6], 0
    %16 = vsyncpa [#allocation9], 0
    %17 = vsyncpa [#allocation4], 0
    // Predicated region
    $region2: #{tpu_custom_call.1} parent=1 // pred_check
      _
    $region3: #{tpu_custom_call.1} parent=1 // pred_check_branch
      %19 = sbr.rel (0) target = $region5
    $region4: #{tpu_custom_call.1} parent=1 // pred_region
      %s21 = ssub.s32 64, 64
      %22 = vsyncadd [#allocation3], %s21
      %s24 = sshll.u32 [#allocation2], 4
      %s25 = int_to_ptr.vmem [resolvable:$true] %s24
      %27 = dma.hbm_to_vmem [thread:$0]  %s0, 64, %s25, [#allocation3]
    $region5: #{tpu_custom_call.1} parent=1 // pred_fallthru
      _
    // Predicated region
    $region6: #{tpu_custom_call.1} parent=1 // pred_check
      _
    $region7: #{tpu_custom_call.1} parent=1 // pred_check_branch
      %29 = sbr.rel (0) target = $region9
    $region8: #{tpu_custom_call.1} parent=1 // pred_region
      %s31 = ssub.s32 256, 256
      %32 = vsyncadd [#allocation6], %s31
      %s33 = sshll.u32 [#allocation5], 4
      %s34 = int_to_ptr.vmem [resolvable:$true] %s33
      %39 = dma.hbm_to_vmem [thread:$0]  %s1, 256, %s34, [#allocation6], 128, 128, 8
    $region9: #{tpu_custom_call.1} parent=1 // pred_fallthru
      _
    // Predicated region
    $region10: #{tpu_custom_call.1} parent=1 // pred_check
      _
    $region11: #{tpu_custom_call.1} parent=1 // pred_check_branch
      %41 = sbr.rel (0) target = $region13
    $region12: #{tpu_custom_call.1} parent=1 // pred_region
      _
    $region13: #{tpu_custom_call.1} parent=1 // pred_fallthru
      _
    // Predicated region
    $region14: #{tpu_custom_call.1} parent=1 // pred_check
      _
    $region15: #{tpu_custom_call.1} parent=1 // pred_check_branch
      %43 = sbr.rel (0) target = $region17
    $region16: #{tpu_custom_call.1} parent=1 // pred_region
      _
    $region17: #{tpu_custom_call.1} parent=1 // pred_fallthru
      _
    // Predicated region
    $region18: #{tpu_custom_call.1} parent=1 // pred_check
      _
    $region19: #{tpu_custom_call.1} parent=1 // pred_check_branch
      %45 = sbr.rel (0) target = $region21
    $region20: #{tpu_custom_call.1} parent=1 // pred_region
      %s47 = ssub.s32 256, 256
      %48 = vsyncadd [#allocation6], %s47
      %s49 = sshll.u32 [#allocation7], 4
      %s50 = int_to_ptr.vmem [resolvable:$true] %s49
      %55 = dma.hbm_to_vmem [thread:$0]  %s4, 256, %s50, [#allocation6], 128, 128, 8
    $region21: #{tpu_custom_call.1} parent=1 // pred_fallthru
      _
    // Predicated region
    $region22: #{tpu_custom_call.1} parent=1 // pred_check
      _
    $region23: #{tpu_custom_call.1} parent=1 // pred_check_branch
      %57 = sbr.rel (0) target = $region25
    $region24: #{tpu_custom_call.1} parent=1 // pred_region
      %s59 = ssub.s32 2048, 2048
      %60 = vsyncadd [#allocation9], %s59
      %s61 = sshll.u32 [#allocation8], 4
      %s62 = int_to_ptr.vmem [resolvable:$true] %s61
      %67 = dma.hbm_to_vmem [thread:$0]  %s5, 2048, %s62, [#allocation9], 128, 128, 8
    $region25: #{tpu_custom_call.1} parent=1 // pred_fallthru
      _
    // Predicated region
    $region26: #{tpu_custom_call.1} parent=1 // pred_check
      _
    $region27: #{tpu_custom_call.1} parent=1 // pred_check_branch
      %69 = sbr.rel (0) target = $region29
    $region28: #{tpu_custom_call.1} parent=1 // pred_region
      _
    $region29: #{tpu_custom_call.1} parent=1 // pred_fallthru
      _
    // Predicated region
    $region30: #{tpu_custom_call.1} parent=1 // pred_check
      _
    $region31: #{tpu_custom_call.1} parent=1 // pred_check_branch
      %71 = sbr.rel (0) target = $region33
    $region32: #{tpu_custom_call.1} parent=1 // pred_region
      %s73 = ssub.s32 2048, 2048
      %74 = vsyncadd [#allocation9], %s73
      %s75 = sshll.u32 [#allocation10], 4
      %s76 = int_to_ptr.vmem [resolvable:$true] %s75
      %81 = dma.hbm_to_vmem [thread:$0]  %s7, 2048, %s76, [#allocation9], 128, 128, 8
    $region33: #{tpu_custom_call.1} parent=1 // pred_fallthru
      _
    // Predicated region
    $region34: #{tpu_custom_call.1} parent=1 // pred_check
      _
    $region35: #{tpu_custom_call.1} parent=1 // pred_check_branch
      %83 = sbr.rel (0) target = $region37
    $region36: #{tpu_custom_call.1} parent=1 // pred_region
      _
    $region37: #{tpu_custom_call.1} parent=1 // pred_fallthru
      _
    // Predicated region
    $region38: #{tpu_custom_call.1} parent=1 // pred_check
      _
    $region39: #{tpu_custom_call.1} parent=1 // pred_check_branch
      %85 = sbr.rel (0) target = $region41
    $region40: #{tpu_custom_call.1} parent=1 // pred_region
      %86 = dma.done [#allocation3], 64
    $region41: #{tpu_custom_call.1} parent=1 // pred_fallthru
      _
    // Predicated region
    $region42: #{tpu_custom_call.1} parent=1 // pred_check
      _
    $region43: #{tpu_custom_call.1} parent=1 // pred_check_branch
      %88 = sbr.rel (0) target = $region45
    $region44: #{tpu_custom_call.1} parent=1 // pred_region
      %89 = dma.done [#allocation6], 256
    $region45: #{tpu_custom_call.1} parent=1 // pred_fallthru
      _
    // Predicated region
    $region46: #{tpu_custom_call.1} parent=1 // pred_check
      _
    $region47: #{tpu_custom_call.1} parent=1 // pred_check_branch
      %91 = sbr.rel (0) target = $region49
    $region48: #{tpu_custom_call.1} parent=1 // pred_region
      %92 = dma.done [#allocation6], 256
    $region49: #{tpu_custom_call.1} parent=1 // pred_fallthru
      _
    // Predicated region
    $region50: #{tpu_custom_call.1} parent=1 // pred_check
      _
    $region51: #{tpu_custom_call.1} parent=1 // pred_check_branch
      %94 = sbr.rel (0) target = $region53
    $region52: #{tpu_custom_call.1} parent=1 // pred_region
      %95 = dma.done [#allocation9], 2048
    $region53: #{tpu_custom_call.1} parent=1 // pred_fallthru
      _
    // Predicated region
    $region54: #{tpu_custom_call.1} parent=1 // pred_check
      _
    $region55: #{tpu_custom_call.1} parent=1 // pred_check_branch
      %97 = sbr.rel (0) target = $region57
    $region56: #{tpu_custom_call.1} parent=1 // pred_region
      %98 = dma.done [#allocation9], 2048
    $region57: #{tpu_custom_call.1} parent=1 // pred_fallthru
      _
    %v99 = vld [vmem:[#allocation2] sm:$0xf]
    %v100 = vmul.f32 %v99, %v99
    %vm101 = vcmask 125952
    %v102 = vsel %vm101, %v100, 0.0
    %103 = vadd.xlane.f32.xlu0 %v102
    %v104 = vpop.xlane.xlu0 %103
    %v105 = vld [vmem:[#allocation5] sm:$0xff]
    %v106 = vld [vmem:[#allocation5 + $0x8] sm:$0xff]
    %v107 = vld [vmem:[%s2] sm:$0x1]
    %v109 = vlaneseq
    %v110 = vshrl.u32 %v109, 7
    %v111 = vsub.s32 0, %v110
    %v112 = vrot.slane %v107, %v111
    %vm114 = vcmask 130048
    %v116 = vsel %vm114, %v99, 0
    %118 = vmatprep.subr.mxu0 0.0
    %119 = vmatpush1.msra.mxu0 %v105
    %120 = vmatprep.subr.mxu0 0.0
    %121 = vmatpush1.msra.mxu0 %v106
    %122 = vmatprep.subr.mxu0 0.0
    %123 = vmatpush1.msra.mxu0 0.0
    %124 = vmatprep.subr.mxu0 0.0
    %125 = vmatpush1.msra.mxu0 0.0
    %126 = vmatprep.subr.mxu0 0.0
    %127 = vmatpush1.msra.mxu0 0.0
    %128 = vmatprep.subr.mxu0 0.0
    %129 = vmatpush1.msra.mxu0 0.0
    %130 = vmatprep.subr.mxu0 0.0
    %131 = vmatpush1.msra.mxu0 0.0
    %132 = vmatprep.subr.mxu0 0.0
    %133 = vmatpush1.msra.mxu0 0.0
    %134 = vmatprep.subr.mxu0 0.0
    %135 = vmatpush1.msra.mxu0 0.0
    %136 = vmatprep.subr.mxu0 0.0
    %137 = vmatpush1.msra.mxu0 0.0
    %138 = vmatprep.subr.mxu0 0.0
    %139 = vmatpush1.msra.mxu0 0.0
    %140 = vmatprep.subr.mxu0 0.0
    %141 = vmatpush1.msra.mxu0 0.0
    %142 = vmatprep.subr.mxu0 0.0
    %143 = vmatpush1.msra.mxu0 0.0
    %144 = vmatprep.subr.mxu0 0.0
    %145 = vmatpush1.msra.mxu0 0.0
    %146 = vmatprep.subr.mxu0 0.0
    %147 = vmatpush1.msra.mxu0 0.0
    %148 = vmatprep.subr.mxu0 0.0
    %149 = vmatpush1.msra.mxu0 0.0
    %150 = vmatprep.subr.mxu0 0.0
    %151 = vmatpush1.msra.mxu0 0.0
    %152 = vmatprep.subr.mxu0 0.0
    %153 = vmatpush1.msra.mxu0 0.0
    %154 = vmatprep.subr.mxu0 0.0
    %155 = vmatpush1.msra.mxu0 0.0
    %156 = vmatprep.subr.mxu0 0.0
    %157 = vmatpush1.msra.mxu0 0.0
    %158 = vmatprep.subr.mxu0 0.0
    %159 = vmatpush1.msra.mxu0 0.0
    %160 = vmatprep.subr.mxu0 0.0
    %161 = vmatpush1.msra.mxu0 0.0
    %162 = vmatprep.subr.mxu0 0.0
    %163 = vmatpush1.msra.mxu0 0.0
    %164 = vmatprep.subr.mxu0 0.0
    %165 = vmatpush1.msra.mxu0 0.0
    %166 = vmatprep.subr.mxu0 0.0
    %167 = vmatpush1.msra.mxu0 0.0
    %168 = vmatprep.subr.mxu0 0.0
    %169 = vmatpush1.msra.mxu0 0.0
    %170 = vmatprep.subr.mxu0 0.0
    %171 = vmatpush1.msra.mxu0 0.0
    %172 = vmatprep.subr.mxu0 0.0
    %173 = vmatpush1.msra.mxu0 0.0
    %174 = vmatprep.subr.mxu0 0.0
    %175 = vmatpush1.msra.mxu0 0.0
    %176 = vmatprep.subr.mxu0 0.0
    %177 = vmatpush1.msra.mxu0 0.0
    %178 = vmatprep.subr.mxu0 0.0
    %179 = vmatpush1.msra.mxu0 0.0
    %180 = vmatprep.subr.mxu0 0.0
    %181 = vmatpush1.msra.mxu0 0.0
    %182 = vmatprep.mubr.f32.mxu0 0.0
    %183 = vmatmul.mubr.f32.gmra.mrb[0].mxu0 %v116
    %v184 = vpop.f32.mrb[0].mxu0
    %v185 = vadd.f32 %v112, %v184
    %v186 = vpop.f32.mrb[0].mxu0
    %187 = vdwg.mxu0
    %v188 = vld [vmem:[%s3] sm:$0x1]
    %v190 = vlaneseq
    %v191 = vshrl.u32 %v190, 7
    %v192 = vsub.s32 0, %v191
    %v193 = vrot.slane %v188, %v192
    %v195 = vmul.f32 %v104, %v193
    %v196 = vsub.f32 %v185, %v195
    %v197 = vmin.f32 %v196, 0.0
    %v198 = vmul.f32 %v197, 1.442695
    %v199 = vpow.pop %v198
    %v200 = vld [vmem:[#allocation7] sm:$0xff]
    %v201 = vld [vmem:[#allocation7 + $0x8] sm:$0xff]
    %v202 = vld [vmem:[#allocation8] sm:$0xff]
    %v203 = vld [vmem:[#allocation8 + $0x8] sm:$0xff]
    %v204 = vld [vmem:[#allocation8 + $0x10] sm:$0xff]
    %v205 = vld [vmem:[#allocation8 + $0x18] sm:$0xff]
    %v206 = vld [vmem:[#allocation8 + $0x20] sm:$0xff]
    %v207 = vld [vmem:[#allocation8 + $0x28] sm:$0xff]
    %v208 = vld [vmem:[#allocation8 + $0x30] sm:$0xff]
    %v209 = vld [vmem:[#allocation8 + $0x38] sm:$0xff]
    %v210 = vld [vmem:[#allocation8 + $0x40] sm:$0xff]
    %v211 = vld [vmem:[#allocation8 + $0x48] sm:$0xff]
    %v212 = vld [vmem:[#allocation8 + $0x50] sm:$0xff]
    %v213 = vld [vmem:[#allocation8 + $0x58] sm:$0xff]
    %v214 = vld [vmem:[#allocation8 + $0x60] sm:$0xff]
    %v215 = vld [vmem:[#allocation8 + $0x68] sm:$0xff]
    %v216 = vld [vmem:[#allocation8 + $0x70] sm:$0xff]
    %v217 = vld [vmem:[#allocation8 + $0x78] sm:$0xff]
    %218 = vmatprep.subr.mxu0 0.0
    %219 = vmatpush1.msra.mxu0 %v202
    %220 = vmatprep.subr.mxu0 0.0
    %221 = vmatpush1.msra.mxu0 %v203
    %222 = vmatprep.subr.mxu0 0.0
    %223 = vmatpush1.msra.mxu0 %v204
    %224 = vmatprep.subr.mxu0 0.0
    %225 = vmatpush1.msra.mxu0 %v205
    %226 = vmatprep.subr.mxu0 0.0
    %227 = vmatpush1.msra.mxu0 %v206
    %228 = vmatprep.subr.mxu0 0.0
    %229 = vmatpush1.msra.mxu0 %v207
    %230 = vmatprep.subr.mxu0 0.0
    %231 = vmatpush1.msra.mxu0 %v208
    %232 = vmatprep.subr.mxu0 0.0
    %233 = vmatpush1.msra.mxu0 %v209
    %234 = vmatprep.subr.mxu0 0.0
    %235 = vmatpush1.msra.mxu0 %v210
    %236 = vmatprep.subr.mxu0 0.0
    %237 = vmatpush1.msra.mxu0 %v211
    %238 = vmatprep.subr.mxu0 0.0
    %239 = vmatpush1.msra.mxu0 %v212
    %240 = vmatprep.subr.mxu0 0.0
    %241 = vmatpush1.msra.mxu0 %v213
    %242 = vmatprep.subr.mxu0 0.0
    %243 = vmatpush1.msra.mxu0 %v214
    %244 = vmatprep.subr.mxu0 0.0
    %245 = vmatpush1.msra.mxu0 %v215
    %246 = vmatprep.subr.mxu0 0.0
    %247 = vmatpush1.msra.mxu0 %v216
    %248 = vmatprep.subr.mxu0 0.0
    %249 = vmatpush1.msra.mxu0 %v217
    %250 = vmatprep.subr.mxu0 0.0
    %251 = vmatpush1.msra.mxu0 0.0
    %252 = vmatprep.subr.mxu0 0.0
    %253 = vmatpush1.msra.mxu0 0.0
    %254 = vmatprep.subr.mxu0 0.0
    %255 = vmatpush1.msra.mxu0 0.0
    %256 = vmatprep.subr.mxu0 0.0
    %257 = vmatpush1.msra.mxu0 0.0
    %258 = vmatprep.subr.mxu0 0.0
    %259 = vmatpush1.msra.mxu0 0.0
    %260 = vmatprep.subr.mxu0 0.0
    %261 = vmatpush1.msra.mxu0 0.0
    %262 = vmatprep.subr.mxu0 0.0
    %263 = vmatpush1.msra.mxu0 0.0
    %264 = vmatprep.subr.mxu0 0.0
    %265 = vmatpush1.msra.mxu0 0.0
    %266 = vmatprep.subr.mxu0 0.0
    %267 = vmatpush1.msra.mxu0 0.0
    %268 = vmatprep.subr.mxu0 0.0
    %269 = vmatpush1.msra.mxu0 0.0
    %270 = vmatprep.subr.mxu0 0.0
    %271 = vmatpush1.msra.mxu0 0.0
    %272 = vmatprep.subr.mxu0 0.0
    %273 = vmatpush1.msra.mxu0 0.0
    %274 = vmatprep.subr.mxu0 0.0
    %275 = vmatpush1.msra.mxu0 0.0
    %276 = vmatprep.subr.mxu0 0.0
    %277 = vmatpush1.msra.mxu0 0.0
    %278 = vmatprep.subr.mxu0 0.0
    %279 = vmatpush1.msra.mxu0 0.0
    %280 = vmatprep.subr.mxu0 0.0
    %281 = vmatpush1.msra.mxu0 0.0
    %282 = vmatprep.mubr.f32.mxu0 0.0
    %283 = vmatmul.mubr.f32.gmra.mrb[0].mxu0 %v199
    %v284 = vpop.f32.mrb[0].mxu0
    %v285 = vadd.f32 0.0, %v284
    %v286 = vpop.f32.mrb[0].mxu0
    %287 = vdwg.mxu0
    %288 = vmatprep.subr.mxu0 0.0
    %289 = vmatpush1.msra.mxu0 %v200
    %290 = vmatprep.subr.mxu0 0.0
    %291 = vmatpush1.msra.mxu0 %v201
    %292 = vmatprep.subr.mxu0 0.0
    %293 = vmatpush1.msra.mxu0 0.0
    %294 = vmatprep.subr.mxu0 0.0
    %295 = vmatpush1.msra.mxu0 0.0
    %296 = vmatprep.subr.mxu0 0.0
    %297 = vmatpush1.msra.mxu0 0.0
    %298 = vmatprep.subr.mxu0 0.0
    %299 = vmatpush1.msra.mxu0 0.0
    %300 = vmatprep.subr.mxu0 0.0
    %301 = vmatpush1.msra.mxu0 0.0
    %302 = vmatprep.subr.mxu0 0.0
    %303 = vmatpush1.msra.mxu0 0.0
    %304 = vmatprep.subr.mxu0 0.0
    %305 = vmatpush1.msra.mxu0 0.0
    %306 = vmatprep.subr.mxu0 0.0
    %307 = vmatpush1.msra.mxu0 0.0
    %308 = vmatprep.subr.mxu0 0.0
    %309 = vmatpush1.msra.mxu0 0.0
    %310 = vmatprep.subr.mxu0 0.0
    %311 = vmatpush1.msra.mxu0 0.0
    %312 = vmatprep.subr.mxu0 0.0
    %313 = vmatpush1.msra.mxu0 0.0
    %314 = vmatprep.subr.mxu0 0.0
    %315 = vmatpush1.msra.mxu0 0.0
    %316 = vmatprep.subr.mxu0 0.0
    %317 = vmatpush1.msra.mxu0 0.0
    %318 = vmatprep.subr.mxu0 0.0
    %319 = vmatpush1.msra.mxu0 0.0
    %320 = vmatprep.subr.mxu0 0.0
    %321 = vmatpush1.msra.mxu0 0.0
    %322 = vmatprep.subr.mxu0 0.0
    %323 = vmatpush1.msra.mxu0 0.0
    %324 = vmatprep.subr.mxu0 0.0
    %325 = vmatpush1.msra.mxu0 0.0
    %326 = vmatprep.subr.mxu0 0.0
    %327 = vmatpush1.msra.mxu0 0.0
    %328 = vmatprep.subr.mxu0 0.0
    %329 = vmatpush1.msra.mxu0 0.0
    %330 = vmatprep.subr.mxu0 0.0
    %331 = vmatpush1.msra.mxu0 0.0
    %332 = vmatprep.subr.mxu0 0.0
    %333 = vmatpush1.msra.mxu0 0.0
    %334 = vmatprep.subr.mxu0 0.0
    %335 = vmatpush1.msra.mxu0 0.0
    %336 = vmatprep.subr.mxu0 0.0
    %337 = vmatpush1.msra.mxu0 0.0
    %338 = vmatprep.subr.mxu0 0.0
    %339 = vmatpush1.msra.mxu0 0.0
    %340 = vmatprep.subr.mxu0 0.0
    %341 = vmatpush1.msra.mxu0 0.0
    %342 = vmatprep.subr.mxu0 0.0
    %343 = vmatpush1.msra.mxu0 0.0
    %344 = vmatprep.subr.mxu0 0.0
    %345 = vmatpush1.msra.mxu0 0.0
    %346 = vmatprep.subr.mxu0 0.0
    %347 = vmatpush1.msra.mxu0 0.0
    %348 = vmatprep.subr.mxu0 0.0
    %349 = vmatpush1.msra.mxu0 0.0
    %350 = vmatprep.subr.mxu0 0.0
    %351 = vmatpush1.msra.mxu0 0.0
    %352 = vmatprep.mubr.f32.mxu0 0.0
    %353 = vmatmul.mubr.f32.gmra.mrb[0].mxu0 %v116
    %v354 = vpop.f32.mrb[0].mxu0
    %v355 = vadd.f32 %v285, %v354
    %v356 = vpop.f32.mrb[0].mxu0
    %357 = vdwg.mxu0
    %v358 = vld [vmem:[%s6] sm:$0x1]
    %v360 = vlaneseq
    %v361 = vshrl.u32 %v360, 7
    %v362 = vsub.s32 0, %v361
    %v363 = vrot.slane %v358, %v362
    %v365 = vadd.f32 %v355, %v363
    %v366 = vmax.f32 %v365, 0.0
    %v367 = vld [vmem:[#allocation10] sm:$0xff]
    %v368 = vld [vmem:[#allocation10 + $0x8] sm:$0xff]
    %v369 = vld [vmem:[#allocation10 + $0x10] sm:$0xff]
    %v370 = vld [vmem:[#allocation10 + $0x18] sm:$0xff]
    %v371 = vld [vmem:[#allocation10 + $0x20] sm:$0xff]
    %v372 = vld [vmem:[#allocation10 + $0x28] sm:$0xff]
    %v373 = vld [vmem:[#allocation10 + $0x30] sm:$0xff]
    %v374 = vld [vmem:[#allocation10 + $0x38] sm:$0xff]
    %v375 = vld [vmem:[#allocation10 + $0x40] sm:$0xff]
    %v376 = vld [vmem:[#allocation10 + $0x48] sm:$0xff]
    %v377 = vld [vmem:[#allocation10 + $0x50] sm:$0xff]
    %v378 = vld [vmem:[#allocation10 + $0x58] sm:$0xff]
    %v379 = vld [vmem:[#allocation10 + $0x60] sm:$0xff]
    %v380 = vld [vmem:[#allocation10 + $0x68] sm:$0xff]
    %v381 = vld [vmem:[#allocation10 + $0x70] sm:$0xff]
    %v382 = vld [vmem:[#allocation10 + $0x78] sm:$0xff]
    %v383 = vld [vmem:[%s8] sm:$0x1]
    %v385 = vlaneseq
    %v386 = vshrl.u32 %v385, 7
    %v387 = vsub.s32 0, %v386
    %v388 = vrot.slane %v383, %v387
    %390 = vmatprep.subr.mxu0 0.0
    %391 = vmatpush1.msra.mxu0 %v367
    %392 = vmatprep.subr.mxu0 0.0
    %393 = vmatpush1.msra.mxu0 %v368
    %394 = vmatprep.subr.mxu0 0.0
    %395 = vmatpush1.msra.mxu0 %v369
    %396 = vmatprep.subr.mxu0 0.0
    %397 = vmatpush1.msra.mxu0 %v370
    %398 = vmatprep.subr.mxu0 0.0
    %399 = vmatpush1.msra.mxu0 %v371
    %400 = vmatprep.subr.mxu0 0.0
    %401 = vmatpush1.msra.mxu0 %v372
    %402 = vmatprep.subr.mxu0 0.0
    %403 = vmatpush1.msra.mxu0 %v373
    %404 = vmatprep.subr.mxu0 0.0
    %405 = vmatpush1.msra.mxu0 %v374
    %406 = vmatprep.subr.mxu0 0.0
    %407 = vmatpush1.msra.mxu0 %v375
    %408 = vmatprep.subr.mxu0 0.0
    %409 = vmatpush1.msra.mxu0 %v376
    %410 = vmatprep.subr.mxu0 0.0
    %411 = vmatpush1.msra.mxu0 %v377
    %412 = vmatprep.subr.mxu0 0.0
    %413 = vmatpush1.msra.mxu0 %v378
    %414 = vmatprep.subr.mxu0 0.0
    %415 = vmatpush1.msra.mxu0 %v379
    %416 = vmatprep.subr.mxu0 0.0
    %417 = vmatpush1.msra.mxu0 %v380
    %418 = vmatprep.subr.mxu0 0.0
    %419 = vmatpush1.msra.mxu0 %v381
    %420 = vmatprep.subr.mxu0 0.0
    %421 = vmatpush1.msra.mxu0 %v382
    %422 = vmatprep.subr.mxu0 0.0
    %423 = vmatpush1.msra.mxu0 0.0
    %424 = vmatprep.subr.mxu0 0.0
    %425 = vmatpush1.msra.mxu0 0.0
    %426 = vmatprep.subr.mxu0 0.0
    %427 = vmatpush1.msra.mxu0 0.0
    %428 = vmatprep.subr.mxu0 0.0
    %429 = vmatpush1.msra.mxu0 0.0
    %430 = vmatprep.subr.mxu0 0.0
    %431 = vmatpush1.msra.mxu0 0.0
    %432 = vmatprep.subr.mxu0 0.0
    %433 = vmatpush1.msra.mxu0 0.0
    %434 = vmatprep.subr.mxu0 0.0
    %435 = vmatpush1.msra.mxu0 0.0
    %436 = vmatprep.subr.mxu0 0.0
    %437 = vmatpush1.msra.mxu0 0.0
    %438 = vmatprep.subr.mxu0 0.0
    %439 = vmatpush1.msra.mxu0 0.0
    %440 = vmatprep.subr.mxu0 0.0
    %441 = vmatpush1.msra.mxu0 0.0
    %442 = vmatprep.subr.mxu0 0.0
    %443 = vmatpush1.msra.mxu0 0.0
    %444 = vmatprep.subr.mxu0 0.0
    %445 = vmatpush1.msra.mxu0 0.0
    %446 = vmatprep.subr.mxu0 0.0
    %447 = vmatpush1.msra.mxu0 0.0
    %448 = vmatprep.subr.mxu0 0.0
    %449 = vmatpush1.msra.mxu0 0.0
    %450 = vmatprep.subr.mxu0 0.0
    %451 = vmatpush1.msra.mxu0 0.0
    %452 = vmatprep.subr.mxu0 0.0
    %453 = vmatpush1.msra.mxu0 0.0
    %454 = vmatprep.mubr.f32.mxu0 0.0
    %455 = vmatmul.mubr.f32.gmra.mrb[0].mxu0 %v366
    %v456 = vpop.f32.mrb[0].mxu0
    %v457 = vadd.f32 %v388, %v456
    %v458 = vpop.f32.mrb[0].mxu0
    %459 = vdwg.mxu0
    %460 = vst [vmem:[#allocation11] sm:$0xf] %v457
    // Predicated region
    $region58: #{tpu_custom_call.1} parent=1 // pred_check
      _
    $region59: #{tpu_custom_call.1} parent=1 // pred_check_branch
      %462 = sbr.rel (0) target = $region61
    $region60: #{tpu_custom_call.1} parent=1 // pred_region
      %s464 = ssub.s32 64, 64
      %465 = vsyncadd [#allocation4], %s464
      %s467 = sshll.u32 [#allocation11], 4
      %s468 = int_to_ptr.vmem [resolvable:$true] %s467
      %470 = dma.vmem_to_hbm [thread:$0]  %s468, 64, %s9, [#allocation4]
    $region61: #{tpu_custom_call.1} parent=1 // pred_fallthru
      _
    // Predicated region
    $region62: #{tpu_custom_call.1} parent=1 // pred_check
      _
    $region63: #{tpu_custom_call.1} parent=1 // pred_check_branch
      %472 = sbr.rel (0) target = $region65
    $region64: #{tpu_custom_call.1} parent=1 // pred_region
      %473 = dma.done [#allocation4], 64
    $region65: #{tpu_custom_call.1} parent=1 // pred_fallthru
      _
    %474 = vsyncpa [#allocation3], 1
    %475 = vsyncpa [#allocation6], 1
    %476 = vsyncpa [#allocation9], 1
    %477 = vsyncpa [#allocation4], 1

</llo_original>
